<compile_context>
chip_gen: v5e
topology: v5e:2x2
jax: 0.10.0
libtpu: 0.0.40
codegen_flags: <defaults>
</compile_context>

<pallas_src>
import jax
import jax.numpy as jnp
from jax import lax
import numpy as np
from jax.experimental import pallas as pl
from jax.experimental.pallas import tpu as pltpu


_CompilerParams = getattr(pltpu, "CompilerParams", None) or getattr(
    pltpu, "TPUCompilerParams", None)


def _round_up(x, m):
    return ((x + m - 1) // m) * m


def _make_kernel(H, W, HW, LP, T, CB, n_cblocks, tap_meta):
    """tap_meta: static tuple of (dh, dw, tap_row)."""
    dws = tuple(sorted({dw for (_, dw, _) in tap_meta if dw != 0}))

    def kernel(x_ref, v_ref, out_ref, ypad_ref):
        # x_ref   : (1, CB, HW)  streamed input channel block (native dtype)
        # v_ref   : (T+1, C)     folded tap weights, row T = mean-path u_m (resident)
        # out_ref : (1, 1, HW)   f32 accumulator, resident across the channel axis
        # ypad_ref: (T+1, Lp)    scratch: channel-contracted tap maps, zero-padded wings
        c_idx = pl.program_id(1)

        # Zero the padding wings every step (tiny; robust no matter which grid
        # point a TensorCore executes first under megacore sharding).
        ypad_ref[:, 0:LP] = jnp.zeros((T + 1, LP), jnp.float32)
        ypad_ref[:, LP + HW:LP + HW + LP] = jnp.zeros((T + 1, LP), jnp.float32)

        if n_cblocks == 1:
            v = v_ref[...]                                       # (T+1, CB)
        else:
            start = pl.multiple_of(c_idx * CB, CB)
            v = v_ref[:, pl.ds(start, CB)]                       # (T+1, CB)

        # Single MXU matmul for all 17 taps + the pooled branch.
        y = jnp.dot(v, x_ref[0], preferred_element_type=jnp.float32)   # (T+1, HW)
        ypad_ref[:, LP:LP + HW] = y          # lane-aligned store (LP % 128 == 0)

        # Pooled branch: per-image scalar = lane-sum of Y[T] (u_m already /(H*W));
        # additive over channel blocks.
        pooled = jnp.sum(y[T:T + 1, :], axis=1, keepdims=True)         # (1, 1)
        acc = jnp.zeros((1, HW), jnp.float32) + pooled

        # Column-validity masks for horizontally shifted taps (the zero padding the
        # dilated convs would see), generated in-kernel from an iota.
        iota = lax.broadcasted_iota(jnp.int32, (1, HW), 1)
        col = (iota & (W - 1)) if (W & (W - 1)) == 0 else (iota % W)
        masks = {dw: (col + dw >= 0) & (col + dw < W) for dw in dws}

        # Tap combination: static lane-shifted (1, HW) slices of the scratch.
        for dh, dw, t in tap_meta:
            s = LP + dh * W + dw
            part = ypad_ref[t:t + 1, s:s + HW]
            if dw != 0:
                part = jnp.where(masks[dw], part, 0.0)
            acc = acc + part

        @pl.when(c_idx == 0)
        def _():
            out_ref[0] = jnp.zeros((1, HW), jnp.float32)
        out_ref[0] = out_ref[0] + acc

    return kernel


def _fold_weights(params, H, W, dtype):
    """Fold the 1-output-channel conv_1x1_output into every branch (trace time)."""
    wm, bm, w1, b1, w6, b6, w12, b12, wo, bo = params
    C = wm.shape[0]
    hp = lax.Precision.HIGHEST
    wo_f = wo.reshape(4 * C)
    wom, wo1, wo6, wo12 = (wo_f[0:C], wo_f[C:2 * C],
                           wo_f[2 * C:3 * C], wo_f[3 * C:4 * C])

    u_m = jnp.einsum('o,oc->c', wom, wm, precision=hp) / float(H * W)   # (C,)
    v1 = jnp.einsum('o,oc->c', wo1, w1, precision=hp)                   # (C,)
    v6 = jnp.einsum('o,ockl->klc', wo6, w6, precision=hp)               # (3,3,C)
    v12 = jnp.einsum('o,ockl->klc', wo12, w12, precision=hp)            # (3,3,C)
    const = (jnp.dot(wom, bm, precision=hp) + jnp.dot(wo1, b1, precision=hp)
             + jnp.dot(wo6, b6, precision=hp) + jnp.dot(wo12, b12, precision=hp)
             + bo[0])

    taps = {}

    def add(dh, dw, vec):
        key = (int(dh), int(dw))
        taps[key] = vec if key not in taps else taps[key] + vec

    add(0, 0, v1)                                   # 1x1 branch = central tap
    for kh in range(3):
        for kw in range(3):
            add((kh - 1) * 6, (kw - 1) * 6, v6[kh, kw])
            add((kh - 1) * 12, (kw - 1) * 12, v12[kh, kw])

    offsets = tuple(sorted(taps.keys()))            # 17 distinct taps (centers merge)
    V_taps = jnp.stack([taps[o] for o in offsets], axis=0)          # (T, C)
    V_all = jnp.concatenate([V_taps, u_m[None, :]], axis=0)         # (T+1, C)
    return offsets, V_all.astype(dtype), const


def _pick_cb(C, HW, itemsize, cap_bytes):
    """Largest divisor of C that is a multiple of 8 (f32 sublane) under the cap."""
    if C * HW * itemsize <= cap_bytes:
        return C
    divs = [d for d in range(8, C, 8) if C % d == 0]
    fitting = [d for d in divs if d * HW * itemsize <= cap_bytes]
    if fitting:
        return max(fitting)
    if divs:
        return min(divs)   # best blockable chunk; still above cap but minimal
    # TODO(synk): C with no multiple-of-8 divisor and an oversized block would need
    # the wrapper to pad C up; fall back to the full channel dim.
    return C


def aspp1_forward(x, params):
    N, C, H, W = x.shape
    HW = H * W
    itemsize = x.dtype.itemsize

    offsets, V_all, const = _fold_weights(params, H, W, x.dtype)
    T = len(offsets)

    # Zero-pad wings of the Y scratch: must cover |dh*W + dw| <= 12*W + 12; rounded
    # up to a lane tile so the central Y store is lane-aligned.
    LP = _round_up(12 * W + 12, 128)
    Lp = HW + 2 * LP

    # Per-generation VMEM budget (v7x: 64 MiB/TC; v5e/v6e: 128 MiB).
    try:
        vmem_cap = int(pltpu.get_tpu_info().vmem_capacity_bytes)
    except Exception:
        vmem_cap = 64 << 20                    # conservative (v7x-safe) default
    block_cap = (4 << 20) if vmem_cap <= (64 << 20) else (12 << 20)

    CB = _pick_cb(C, HW, itemsize, block_cap)
    nC = C // CB

    tap_meta = tuple((dh, dw, t) for t, (dh, dw) in enumerate(offsets))
    kernel = _make_kernel(H, W, HW, LP, T, CB, nC, tap_meta)

    x_flat = x.reshape(N, C, HW)               # free reshape; no HBM pad copy

    # vmem_limit from the actual allocation (triple-buffered x worst case, the Y
    # scratch, resident weights, output block) + headroom, capped below physical.
    need = (3 * CB * HW * itemsize + (T + 1) * Lp * 4
            + 2 * (T + 1) * C * 4 + 2 * HW * 4)
    vmem_limit = int(max(32 << 20, min(need + (8 << 20), vmem_cap - (16 << 20))))

    x_idx = lambda n, c: (n, c, 0)
    x_spec = pl.BlockSpec((1, CB, HW), x_idx)
    buffered = getattr(pl, "Buffered", None)
    if buffered is not None and N * nC >= 4:
        # Deeper buffering on the streamed input: per-step compute is now a single
        # small matmul, so the DMA would otherwise be exposed (v5e/v6e).
        try:
            x_spec = pl.BlockSpec((1, CB, HW), x_idx, pipeline_mode=buffered(3))
        except TypeError:
            pass

    compiler_params = None
    if _CompilerParams is not None:
        compiler_params = _CompilerParams(
            dimension_semantics=("parallel", "arbitrary"),
            vmem_limit_bytes=vmem_limit,
        )

    inner = pl.pallas_call(
        kernel,
        out_shape=jax.ShapeDtypeStruct((N, 1, HW), jnp.float32),
        grid_spec=pltpu.PrefetchScalarGridSpec(
            num_scalar_prefetch=0,
            grid=(N, nC),                               # channel reduction axis last
            in_specs=[
                x_spec,                                             # streamed x
                pl.BlockSpec((T + 1, C), lambda n, c: (0, 0)),      # resident weights
            ],
            out_specs=pl.BlockSpec((1, 1, HW), lambda n, c: (n, 0, 0)),
            scratch_shapes=[pltpu.VMEM((T + 1, Lp), jnp.float32)],
        ),
        compiler_params=compiler_params,
    )(x_flat, V_all)

    # Folded scalar bias (branch biases through the output conv + its own bias).
    inner = inner + const.astype(jnp.float32)

    # conv_1x1_output has padding=C: the border ring sees all-zero inputs, so its
    # value there is exactly the bias -> emit the ring with lax.pad in the wrapper.
    bo = params[-1]
    out = inner.reshape(N, 1, H, W)
    out = lax.pad(out, bo.reshape(()).astype(out.dtype),
                  [(0, 0, 0), (0, 0, 0), (C, C, 0), (C, C, 0)])
    return out


def aspp1_reference(x, params):
    """Pure-JAX reference of the PyTorch forward (for correctness check)."""
    wm, bm, w1, b1, w6, b6, w12, b12, wo, bo = params
    N, C, H, W = x.shape
    hp = lax.Precision.HIGHEST
    m = jnp.mean(x, axis=(2, 3), keepdims=True)
    imf = jnp.einsum('oc,nchw->nohw', wm, m, precision=hp) + bm[None, :, None, None]
    imf = jnp.broadcast_to(imf, (N, C, H, W))
    a1 = jnp.einsum('oc,nchw->nohw', w1, x, precision=hp) + b1[None, :, None, None]

    def dil(w, b, d):
        y = lax.conv_general_dilated(
            x, w, window_strides=(1, 1), padding=((d, d), (d, d)),
            rhs_dilation=(d, d), dimension_numbers=('NCHW', 'OIHW', 'NCHW'),
            precision=hp)
        return y + b[None, :, None, None]

    a6 = dil(w6, b6, 6)
    a12 = dil(w12, b12, 12)
    cat = jnp.concatenate([imf, a1, a6, a12], axis=1)
    catp = jnp.pad(cat, ((0, 0), (0, 0), (C, C), (C, C)))
    out = jnp.einsum('oc,nchw->nohw', wo, catp, precision=hp) + bo.reshape(1, 1, 1, 1)
    return out


def init_params(key, C):
    """Deterministic synthetic init (PyTorch-conv-like uniform fan-in scaling)."""
    ks = jax.random.split(key, 10)

    def u(k, shape, fan_in):
        bound = 1.0 / np.sqrt(fan_in)
        return jax.random.uniform(k, shape, jnp.float32, -bound, bound)

    wm = u(ks[0], (C, C), C);            bm = u(ks[1], (C,), C)
    w1 = u(ks[2], (C, C), C);            b1 = u(ks[3], (C,), C)
    w6 = u(ks[4], (C, C, 3, 3), 9 * C);  b6 = u(ks[5], (C,), 9 * C)
    w12 = u(ks[6], (C, C, 3, 3), 9 * C); b12 = u(ks[7], (C,), 9 * C)
    wo = u(ks[8], (1, 4 * C), 4 * C);    bo = u(ks[9], (1,), 4 * C)
    return (wm, bm, w1, b1, w6, b6, w12, b12, wo, bo)


if __name__ == "__main__":
    key = jax.random.PRNGKey(0)
    kx, kp = jax.random.split(key)
    N, C, H, W = 2, 4, 16, 16
    x = jax.random.normal(kx, (N, C, H, W), jnp.float32)
    params = init_params(kp, C)

    out = jax.jit(aspp1_forward)(x, params)
    out = jax.block_until_ready(out)

    assert out.shape == (N, 1, H + 2 * C, W + 2 * C), out.shape
    ref = aspp1_reference(x, params)
    np.testing.assert_allclose(np.asarray(out), np.asarray(ref), rtol=2e-2, atol=2e-2)
    print("KERNEL_OK")
</pallas_src>

<mosaic_0001>
module attributes {stable_mosaic.version = 11 : i64} {
  func.func @kernel(%arg0: i32, %arg1: i32, %arg2: memref<1x4x256xf32, #tpu.memory_space<vmem>>, %arg3: memref<18x4xf32, #tpu.memory_space<vmem>>, %arg4: memref<1x1x256xf32, #tpu.memory_space<vmem>>, %arg5: memref<18x768xf32, #tpu.memory_space<vmem>>) attributes {dimension_semantics = [#tpu.dimension_semantics<parallel>, #tpu.dimension_semantics<arbitrary>], iteration_bounds = array<i64: 2, 1>, scalar_prefetch = 0 : i64, scratch_operands = 1 : i64, tpu.core_type = #tpu.core_type<tc>, window_params = [{transform_indices = @transform_0, window_bounds = array<i64: 1, 4, 256>}, {pipeline_mode = #tpu.pipeline_mode<synchronous>, transform_indices = @transform_1, window_bounds = array<i64: 18, 4>}, {transform_indices = @transform_2, window_bounds = array<i64: 1, 1, 256>}]} {
    %cst = arith.constant 0.000000e+00 : f32
    %0 = vector.broadcast %cst : f32 to vector<18x256xf32>
    %c0 = arith.constant 0 : index
    %c0_0 = arith.constant 0 : index
    %1 = vector.load %arg5[%c0, %c0_0] : memref<18x768xf32, #tpu.memory_space<vmem>>, vector<18x256xf32>
    tpu.vector_store %arg5[%c0, %c0_0], %0 {strides = array<i32>} : memref<18x768xf32, #tpu.memory_space<vmem>>, vector<18x256xf32>,
    %cst_1 = arith.constant 0.000000e+00 : f32
    %2 = vector.broadcast %cst_1 : f32 to vector<18x256xf32>
    %c0_2 = arith.constant 0 : index
    %c512 = arith.constant 512 : index
    %3 = vector.load %arg5[%c0_2, %c512] : memref<18x768xf32, #tpu.memory_space<vmem>>, vector<18x256xf32>
    tpu.vector_store %arg5[%c0_2, %c512], %2 {strides = array<i32>} : memref<18x768xf32, #tpu.memory_space<vmem>>, vector<18x256xf32>,
    %c0_3 = arith.constant 0 : index
    %c0_4 = arith.constant 0 : index
    %4 = vector.load %arg3[%c0_3, %c0_4] : memref<18x4xf32, #tpu.memory_space<vmem>>, vector<18x4xf32>
    %c0_5 = arith.constant 0 : index
    %c0_6 = arith.constant 0 : index
    %c0_7 = arith.constant 0 : index
    %5 = vector.load %arg2[%c0_5, %c0_6, %c0_7] : memref<1x4x256xf32, #tpu.memory_space<vmem>>, vector<1x4x256xf32>
    %6 = vector.shape_cast %5 : vector<1x4x256xf32> to vector<4x256xf32>
    %cst_8 = arith.constant dense<0.000000e+00> : vector<18x256xf32>
    %7 = tpu.matmul %4, %6, %cst_8 {dimension_numbers = #tpu.dot_dimension_numbers<[1], [0], [0], [1], [0, 0, 1, 1], [], []>} : vector<18x4xf32>, vector<4x256xf32>, vector<18x256xf32> -> vector<18x256xf32>
    %c0_9 = arith.constant 0 : index
    %c256 = arith.constant 256 : index
    %8 = vector.load %arg5[%c0_9, %c256] : memref<18x768xf32, #tpu.memory_space<vmem>>, vector<18x256xf32>
    tpu.vector_store %arg5[%c0_9, %c256], %7 {strides = array<i32>} : memref<18x768xf32, #tpu.memory_space<vmem>>, vector<18x256xf32>,
    %9 = vector.extract_strided_slice %7 {offsets = [17, 0], sizes = [1, 256], strides = [1, 1]} : vector<18x256xf32> to vector<1x256xf32>
    %cst_10 = arith.constant dense<0.000000e+00> : vector<1xf32>
    %10 = vector.multi_reduction <add>, %9, %cst_10 [1] : vector<1x256xf32> to vector<1xf32>
    %11 = vector.shape_cast %10 : vector<1xf32> to vector<1x1xf32>
    %cst_11 = arith.constant 0.000000e+00 : f32
    %12 = vector.broadcast %cst_11 : f32 to vector<1x256xf32>
    %13 = vector.broadcast %11 : vector<1x1xf32> to vector<1x256xf32>
    %14 = arith.addf %12, %13 : vector<1x256xf32>
    %15 = tpu.iota {dimensions = array<i32: 1>} : vector<1x256xi32>
    %c15_i32 = arith.constant 15 : i32
    %16 = vector.broadcast %c15_i32 : i32 to vector<1x256xi32>
    %17 = arith.andi %15, %16 : vector<1x256xi32>
    %c-12_i32 = arith.constant -12 : i32
    %18 = vector.broadcast %c-12_i32 : i32 to vector<1x256xi32>
    %19 = arith.addi %17, %18 : vector<1x256xi32>
    %c0_i32 = arith.constant 0 : i32
    %20 = vector.broadcast %c0_i32 : i32 to vector<1x256xi32>
    %21 = arith.cmpi sge, %19, %20 : vector<1x256xi32>
    %c-12_i32_12 = arith.constant -12 : i32
    %22 = vector.broadcast %c-12_i32_12 : i32 to vector<1x256xi32>
    %23 = arith.addi %17, %22 : vector<1x256xi32>
    %c16_i32 = arith.constant 16 : i32
    %24 = vector.broadcast %c16_i32 : i32 to vector<1x256xi32>
    %25 = arith.cmpi slt, %23, %24 : vector<1x256xi32>
    %26 = arith.andi %21, %25 : vector<1x256xi1>
    %c-6_i32 = arith.constant -6 : i32
    %27 = vector.broadcast %c-6_i32 : i32 to vector<1x256xi32>
    %28 = arith.addi %17, %27 : vector<1x256xi32>
    %c0_i32_13 = arith.constant 0 : i32
    %29 = vector.broadcast %c0_i32_13 : i32 to vector<1x256xi32>
    %30 = arith.cmpi sge, %28, %29 : vector<1x256xi32>
    %c-6_i32_14 = arith.constant -6 : i32
    %31 = vector.broadcast %c-6_i32_14 : i32 to vector<1x256xi32>
    %32 = arith.addi %17, %31 : vector<1x256xi32>
    %c16_i32_15 = arith.constant 16 : i32
    %33 = vector.broadcast %c16_i32_15 : i32 to vector<1x256xi32>
    %34 = arith.cmpi slt, %32, %33 : vector<1x256xi32>
    %35 = arith.andi %30, %34 : vector<1x256xi1>
    %c6_i32 = arith.constant 6 : i32
    %36 = vector.broadcast %c6_i32 : i32 to vector<1x256xi32>
    %37 = arith.addi %17, %36 : vector<1x256xi32>
    %c0_i32_16 = arith.constant 0 : i32
    %38 = vector.broadcast %c0_i32_16 : i32 to vector<1x256xi32>
    %39 = arith.cmpi sge, %37, %38 : vector<1x256xi32>
    %c6_i32_17 = arith.constant 6 : i32
    %40 = vector.broadcast %c6_i32_17 : i32 to vector<1x256xi32>
    %41 = arith.addi %17, %40 : vector<1x256xi32>
    %c16_i32_18 = arith.constant 16 : i32
    %42 = vector.broadcast %c16_i32_18 : i32 to vector<1x256xi32>
    %43 = arith.cmpi slt, %41, %42 : vector<1x256xi32>
    %44 = arith.andi %39, %43 : vector<1x256xi1>
    %c12_i32 = arith.constant 12 : i32
    %45 = vector.broadcast %c12_i32 : i32 to vector<1x256xi32>
    %46 = arith.addi %17, %45 : vector<1x256xi32>
    %c0_i32_19 = arith.constant 0 : i32
    %47 = vector.broadcast %c0_i32_19 : i32 to vector<1x256xi32>
    %48 = arith.cmpi sge, %46, %47 : vector<1x256xi32>
    %c12_i32_20 = arith.constant 12 : i32
    %49 = vector.broadcast %c12_i32_20 : i32 to vector<1x256xi32>
    %50 = arith.addi %17, %49 : vector<1x256xi32>
    %c16_i32_21 = arith.constant 16 : i32
    %51 = vector.broadcast %c16_i32_21 : i32 to vector<1x256xi32>
    %52 = arith.cmpi slt, %50, %51 : vector<1x256xi32>
    %53 = arith.andi %48, %52 : vector<1x256xi1>
    %c0_22 = arith.constant 0 : index
    %c52 = arith.constant 52 : index
    %54 = vector.load %arg5[%c0_22, %c52] : memref<18x768xf32, #tpu.memory_space<vmem>>, vector<1x256xf32>
    %cst_23 = arith.constant 0.000000e+00 : f32
    %55 = vector.broadcast %cst_23 : f32 to vector<1x256xf32>
    %56 = arith.select %26, %54, %55 : vector<1x256xi1>, vector<1x256xf32>
    %57 = arith.addf %14, %56 : vector<1x256xf32>
    %c1 = arith.constant 1 : index
    %c64 = arith.constant 64 : index
    %58 = vector.load %arg5[%c1, %c64] : memref<18x768xf32, #tpu.memory_space<vmem>>, vector<1x256xf32>
    %59 = arith.addf %57, %58 : vector<1x256xf32>
    %c2 = arith.constant 2 : index
    %c76 = arith.constant 76 : index
    %60 = vector.load %arg5[%c2, %c76] : memref<18x768xf32, #tpu.memory_space<vmem>>, vector<1x256xf32>
    %cst_24 = arith.constant 0.000000e+00 : f32
    %61 = vector.broadcast %cst_24 : f32 to vector<1x256xf32>
    %62 = arith.select %53, %60, %61 : vector<1x256xi1>, vector<1x256xf32>
    %63 = arith.addf %59, %62 : vector<1x256xf32>
    %c3 = arith.constant 3 : index
    %c154 = arith.constant 154 : index
    %64 = vector.load %arg5[%c3, %c154] : memref<18x768xf32, #tpu.memory_space<vmem>>, vector<1x256xf32>
    %cst_25 = arith.constant 0.000000e+00 : f32
    %65 = vector.broadcast %cst_25 : f32 to vector<1x256xf32>
    %66 = arith.select %35, %64, %65 : vector<1x256xi1>, vector<1x256xf32>
    %67 = arith.addf %63, %66 : vector<1x256xf32>
    %c4 = arith.constant 4 : index
    %c160 = arith.constant 160 : index
    %68 = vector.load %arg5[%c4, %c160] : memref<18x768xf32, #tpu.memory_space<vmem>>, vector<1x256xf32>
    %69 = arith.addf %67, %68 : vector<1x256xf32>
    %c5 = arith.constant 5 : index
    %c166 = arith.constant 166 : index
    %70 = vector.load %arg5[%c5, %c166] : memref<18x768xf32, #tpu.memory_space<vmem>>, vector<1x256xf32>
    %cst_26 = arith.constant 0.000000e+00 : f32
    %71 = vector.broadcast %cst_26 : f32 to vector<1x256xf32>
    %72 = arith.select %44, %70, %71 : vector<1x256xi1>, vector<1x256xf32>
    %73 = arith.addf %69, %72 : vector<1x256xf32>
    %c6 = arith.constant 6 : index
    %c244 = arith.constant 244 : index
    %74 = vector.load %arg5[%c6, %c244] : memref<18x768xf32, #tpu.memory_space<vmem>>, vector<1x256xf32>
    %cst_27 = arith.constant 0.000000e+00 : f32
    %75 = vector.broadcast %cst_27 : f32 to vector<1x256xf32>
    %76 = arith.select %26, %74, %75 : vector<1x256xi1>, vector<1x256xf32>
    %77 = arith.addf %73, %76 : vector<1x256xf32>
    %c7 = arith.constant 7 : index
    %c250 = arith.constant 250 : index
    %78 = vector.load %arg5[%c7, %c250] : memref<18x768xf32, #tpu.memory_space<vmem>>, vector<1x256xf32>
    %cst_28 = arith.constant 0.000000e+00 : f32
    %79 = vector.broadcast %cst_28 : f32 to vector<1x256xf32>
    %80 = arith.select %35, %78, %79 : vector<1x256xi1>, vector<1x256xf32>
    %81 = arith.addf %77, %80 : vector<1x256xf32>
    %c8 = arith.constant 8 : index
    %c256_29 = arith.constant 256 : index
    %82 = vector.load %arg5[%c8, %c256_29] : memref<18x768xf32, #tpu.memory_space<vmem>>, vector<1x256xf32>
    %83 = arith.addf %81, %82 : vector<1x256xf32>
    %c9 = arith.constant 9 : index
    %c262 = arith.constant 262 : index
    %84 = vector.load %arg5[%c9, %c262] : memref<18x768xf32, #tpu.memory_space<vmem>>, vector<1x256xf32>
    %cst_30 = arith.constant 0.000000e+00 : f32
    %85 = vector.broadcast %cst_30 : f32 to vector<1x256xf32>
    %86 = arith.select %44, %84, %85 : vector<1x256xi1>, vector<1x256xf32>
    %87 = arith.addf %83, %86 : vector<1x256xf32>
    %c10 = arith.constant 10 : index
    %c268 = arith.constant 268 : index
    %88 = vector.load %arg5[%c10, %c268] : memref<18x768xf32, #tpu.memory_space<vmem>>, vector<1x256xf32>
    %cst_31 = arith.constant 0.000000e+00 : f32
    %89 = vector.broadcast %cst_31 : f32 to vector<1x256xf32>
    %90 = arith.select %53, %88, %89 : vector<1x256xi1>, vector<1x256xf32>
    %91 = arith.addf %87, %90 : vector<1x256xf32>
    %c11 = arith.constant 11 : index
    %c346 = arith.constant 346 : index
    %92 = vector.load %arg5[%c11, %c346] : memref<18x768xf32, #tpu.memory_space<vmem>>, vector<1x256xf32>
    %cst_32 = arith.constant 0.000000e+00 : f32
    %93 = vector.broadcast %cst_32 : f32 to vector<1x256xf32>
    %94 = arith.select %35, %92, %93 : vector<1x256xi1>, vector<1x256xf32>
    %95 = arith.addf %91, %94 : vector<1x256xf32>
    %c12 = arith.constant 12 : index
    %c352 = arith.constant 352 : index
    %96 = vector.load %arg5[%c12, %c352] : memref<18x768xf32, #tpu.memory_space<vmem>>, vector<1x256xf32>
    %97 = arith.addf %95, %96 : vector<1x256xf32>
    %c13 = arith.constant 13 : index
    %c358 = arith.constant 358 : index
    %98 = vector.load %arg5[%c13, %c358] : memref<18x768xf32, #tpu.memory_space<vmem>>, vector<1x256xf32>
    %cst_33 = arith.constant 0.000000e+00 : f32
    %99 = vector.broadcast %cst_33 : f32 to vector<1x256xf32>
    %100 = arith.select %44, %98, %99 : vector<1x256xi1>, vector<1x256xf32>
    %101 = arith.addf %97, %100 : vector<1x256xf32>
    %c14 = arith.constant 14 : index
    %c436 = arith.constant 436 : index
    %102 = vector.load %arg5[%c14, %c436] : memref<18x768xf32, #tpu.memory_space<vmem>>, vector<1x256xf32>
    %cst_34 = arith.constant 0.000000e+00 : f32
    %103 = vector.broadcast %cst_34 : f32 to vector<1x256xf32>
    %104 = arith.select %26, %102, %103 : vector<1x256xi1>, vector<1x256xf32>
    %105 = arith.addf %101, %104 : vector<1x256xf32>
    %c15 = arith.constant 15 : index
    %c448 = arith.constant 448 : index
    %106 = vector.load %arg5[%c15, %c448] : memref<18x768xf32, #tpu.memory_space<vmem>>, vector<1x256xf32>
    %107 = arith.addf %105, %106 : vector<1x256xf32>
    %c16 = arith.constant 16 : index
    %c460 = arith.constant 460 : index
    %108 = vector.load %arg5[%c16, %c460] : memref<18x768xf32, #tpu.memory_space<vmem>>, vector<1x256xf32>
    %cst_35 = arith.constant 0.000000e+00 : f32
    %109 = vector.broadcast %cst_35 : f32 to vector<1x256xf32>
    %110 = arith.select %53, %108, %109 : vector<1x256xi1>, vector<1x256xf32>
    %111 = arith.addf %107, %110 : vector<1x256xf32>
    %c0_i32_36 = arith.constant 0 : i32
    %112 = arith.cmpi eq, %arg1, %c0_i32_36 : i32
    %113 = arith.extui %112 : i1 to i32
    %c0_i32_37 = arith.constant 0 : i32
    %114 = arith.cmpi ne, %113, %c0_i32_37 : i32
    scf.if %114 {
      %cst_44 = arith.constant 0.000000e+00 : f32
      %121 = vector.broadcast %cst_44 : f32 to vector<1x256xf32>
      %c0_45 = arith.constant 0 : index
      %c0_46 = arith.constant 0 : index
      %c0_47 = arith.constant 0 : index
      %122 = vector.load %arg4[%c0_45, %c0_46, %c0_47] : memref<1x1x256xf32, #tpu.memory_space<vmem>>, vector<1x1x256xf32>
      %123 = vector.shape_cast %122 : vector<1x1x256xf32> to vector<1x256xf32>
      %124 = vector.shape_cast %121 : vector<1x256xf32> to vector<1x1x256xf32>
      tpu.vector_store %arg4[%c0_45, %c0_46, %c0_47], %124 {strides = array<i32>} : memref<1x1x256xf32, #tpu.memory_space<vmem>>, vector<1x1x256xf32>,
    } else {
    }
    %c0_38 = arith.constant 0 : index
    %c0_39 = arith.constant 0 : index
    %c0_40 = arith.constant 0 : index
    %115 = vector.load %arg4[%c0_38, %c0_39, %c0_40] : memref<1x1x256xf32, #tpu.memory_space<vmem>>, vector<1x1x256xf32>
    %116 = vector.shape_cast %115 : vector<1x1x256xf32> to vector<1x256xf32>
    %117 = arith.addf %116, %111 : vector<1x256xf32>
    %c0_41 = arith.constant 0 : index
    %c0_42 = arith.constant 0 : index
    %c0_43 = arith.constant 0 : index
    %118 = vector.load %arg4[%c0_41, %c0_42, %c0_43] : memref<1x1x256xf32, #tpu.memory_space<vmem>>, vector<1x1x256xf32>
    %119 = vector.shape_cast %118 : vector<1x1x256xf32> to vector<1x256xf32>
    %120 = vector.shape_cast %117 : vector<1x256xf32> to vector<1x1x256xf32>
    tpu.vector_store %arg4[%c0_41, %c0_42, %c0_43], %120 {strides = array<i32>} : memref<1x1x256xf32, #tpu.memory_space<vmem>>, vector<1x1x256xf32>,
    return
  }
  func.func @transform_0(%arg0: i32, %arg1: i32) -> (i32, i32, i32) {
    %c0_i32 = arith.constant 0 : i32
    %c0_i32_0 = arith.constant 0 : i32
    return %arg0, %arg1, %c0_i32 : i32, i32, i32
  }
  func.func @transform_1(%arg0: i32, %arg1: i32) -> (i32, i32) {
    %c0_i32 = arith.constant 0 : i32
    %c0_i32_0 = arith.constant 0 : i32
    %c0_i32_1 = arith.constant 0 : i32
    return %c0_i32, %c0_i32_0 : i32, i32
  }
  func.func @transform_2(%arg0: i32, %arg1: i32) -> (i32, i32, i32) {
    %c0_i32 = arith.constant 0 : i32
    %c0_i32_0 = arith.constant 0 : i32
    %c0_i32_1 = arith.constant 0 : i32
    return %arg0, %c0_i32, %c0_i32_0 : i32, i32, i32
  }
}

</mosaic_0001>

<llo_original>
// kernel: aspp1_forward.1
$region0: #{aspp1_forward.1}
  #allocation0 [shape = 'u32[]', space=smem, size = 0x4, offset = 0x4, fixed_abs, tag = 'smem constant byte address 0x4 - core index']
  #allocation1 [shape = 'u32[72,128]{1,0:T(1,128)}', space=vmem, size = 0x9000, scoped, tag = 'internal scratch']
  #allocation2 [shape = 'f32[18,768]{1,0:T(8,128)}', space=vmem, size = 0x12000, scoped, tag = 'scratch operand']
  %s0 = inlined_call_operand.vmem [shape: f32[2,4,256], index: 0, kind: input, shape index: {}]
  %s1 = inlined_call_operand.vmem [shape: f32[18,4], index: 1, kind: input, shape index: {}]
  %s2 = inlined_call_operand.vmem [shape: f32[2,1,256], index: 2, kind: output, shape index: {}]
  %s3 = sld [smem:[#allocation0]]
  $region45: #{aspp1_forward.1} parent=0
    _
  %s5 = ssub.s32 1, %s3
  %s6 = scalar_select 0, %s5, %s3
  loop: start=0, step=1, limit=4
  $region2: #{aspp1_forward.1} parent=0 // loop_pre_header
    _
  $region3: #{aspp1_forward.1} parent=0 // loop_header
    %s8 = sphi 0, %s12
    %p9 = scmp.ge.s32.totalorder %s8, 4
    %s15 = sphi 0, %s27
    %s16 = sphi 0, %s23
    %s17 = sphi 0, %s15
    %s18 = sphi 0, %s16
    %s19 = sphi 0, %s17
    %s20 = sphi 0, %s18
    %s32 = sphi 0, %s34
    %s35 = sphi 0, %s32
    %s36 = sphi 0, %s35
    %s52 = sphi 0, %s36
    %s56 = sphi 0, %s56
    %s58 = sphi 0, %s56
    %s59 = sphi 0, %s58
    %s73 = sphi 0, %s59
    %s79 = sphi 0, %s81
    %s82 = sphi 0, %s79
    %s83 = sphi 0, %s82
    %s99 = sphi 0, %s83
  $region4: #{aspp1_forward.1} parent=0 // loop_header_branch
    %11 = sbr.rel (%p9) target = $region8
  $region5: #{aspp1_forward.1} parent=0 // loop_body
    %s13 = ssub.s32 %s8, 1
    %s14 = ssub.s32 %s8, 2
    %s21 = sadd.s32 1, %s16
    %p22 = scmp.ge.s32.totalorder %s21, 1
    %s23 = scalar_select %p22, 0, %s21
    %s24 = sadd.s32 1, %s15
    %s25 = scalar_select %p22, %s24, %s15
    %p26 = scmp.ge.s32.totalorder %s25, 2
    %s27 = scalar_select %p26, 0, %s25
    %s28 = ssub.s32 %s15, %s27
    %s29 = ssub.s32 %s16, %s23
    %s30 = sor.u32 %s28, %s29
    %p31 = scmp.eq.s32.totalorder %s30, 0
    %s33 = sadd.s32 %s32, 1
    %s34 = scalar_select %p31, %s32, %s33
    %p37 = pneg %p31
    %p38 = scmp.eq.s32.totalorder %s8, 1
    %p39 = por %p37, %p38
    %p40 = scmp.ne.s32.totalorder %s32, %s35
    %p41 = scmp.eq.s32.totalorder %s8, 0
    %p42 = por %p40, %p41
    %p43 = scmp.ne.s32.totalorder %s32, %s35
    %p44 = scmp.eq.s32.totalorder %s13, 1
    %p45 = por %p43, %p44
    %p46 = scmp.ne.s32.totalorder %s35, %s36
    %p47 = scmp.eq.s32.totalorder %s13, 0
    %p48 = por %p46, %p47
    %p49 = scmp.ne.s32.totalorder %s35, %s36
    %p50 = scmp.eq.s32.totalorder %s14, 1
    %p51 = por %p49, %p50
    %p53 = scmp.ne.s32.totalorder %s36, %s52
    %p54 = scmp.eq.s32.totalorder %s14, 0
    %p55 = por %p53, %p54
    %s57 = sadd.s32 %s56, 1
    %p60 = scmp.eq.s32.totalorder %s8, 1
    %p61 = scmp.ne.s32.totalorder %s56, %s58
    %p62 = scmp.eq.s32.totalorder %s8, 0
    %p63 = por %p61, %p62
    %p64 = scmp.ne.s32.totalorder %s56, %s58
    %p65 = scmp.eq.s32.totalorder %s13, 1
    %p66 = por %p64, %p65
    %p67 = scmp.ne.s32.totalorder %s58, %s59
    %p68 = scmp.eq.s32.totalorder %s13, 0
    %p69 = por %p67, %p68
    %p70 = scmp.ne.s32.totalorder %s58, %s59
    %p71 = scmp.eq.s32.totalorder %s14, 1
    %p72 = por %p70, %p71
    %p74 = scmp.ne.s32.totalorder %s59, %s73
    %p75 = scmp.eq.s32.totalorder %s14, 0
    %p76 = por %p74, %p75
    %s77 = ssub.s32 %s15, %s27
    %p78 = scmp.eq.s32.totalorder %s77, 0
    %s80 = sadd.s32 %s79, 1
    %s81 = scalar_select %p78, %s79, %s80
    %p84 = pneg %p78
    %p85 = scmp.eq.s32.totalorder %s8, 1
    %p86 = por %p84, %p85
    %p87 = scmp.ne.s32.totalorder %s79, %s82
    %p88 = scmp.eq.s32.totalorder %s8, 0
    %p89 = por %p87, %p88
    %p90 = scmp.ne.s32.totalorder %s79, %s82
    %p91 = scmp.eq.s32.totalorder %s13, 1
    %p92 = por %p90, %p91
    %p93 = scmp.ne.s32.totalorder %s82, %s83
    %p94 = scmp.eq.s32.totalorder %s13, 0
    %p95 = por %p93, %p94
    %p96 = scmp.ne.s32.totalorder %s82, %s83
    %p97 = scmp.eq.s32.totalorder %s14, 1
    %p98 = por %p96, %p97
    %p100 = scmp.ne.s32.totalorder %s83, %s99
    %p101 = scmp.eq.s32.totalorder %s14, 0
    %p102 = por %p100, %p101
    %p103 = scmp.le.s32.totalorder 1, %s8
    %p104 = scmp.lt.s32.totalorder %s8, 3
    %p105 = pnand %p103, %p104
    %p106 = pneg %p105
    // Predicated region
    $region9: #{aspp1_forward.1} parent=5 // pred_check
      _
    $region10: #{aspp1_forward.1} parent=5 // pred_check_branch
      %108 = sbr.rel (%p105) target = $region12
    $region11: #{aspp1_forward.1} parent=5 // pred_region
      %s109 = ssub.s32 %s8, 1
      // Predicated region
      $region13: #{aspp1_forward.1} parent=11 // pred_check
        %p110 = pneg %p69
      $region14: #{aspp1_forward.1} parent=11 // pred_check_branch
        %112 = sbr.rel (%p110) target = $region16
      $region15: #{aspp1_forward.1} parent=11 // pred_region
        _
      $region16: #{aspp1_forward.1} parent=11 // pred_fallthru
        _
    $region12: #{aspp1_forward.1} parent=5 // pred_fallthru
      _
    %p113 = scmp.lt.s32.totalorder %s8, 2
    // Predicated region
    $region17: #{aspp1_forward.1} parent=5 // pred_check
      %p114 = pneg %p113
    $region18: #{aspp1_forward.1} parent=5 // pred_check_branch
      %116 = sbr.rel (%p114) target = $region20
    $region19: #{aspp1_forward.1} parent=5 // pred_region
      // Predicated region
      $region21: #{aspp1_forward.1} parent=19 // pred_check
        %p117 = pneg %p42
      $region22: #{aspp1_forward.1} parent=19 // pred_check_branch
        %119 = sbr.rel (%p117) target = $region24
      $region23: #{aspp1_forward.1} parent=19 // pred_region
        %p120 = scmp.lt.s32.totalorder %s15, 1
        %s121 = scalar_select %p120, %s15, 1
        %p122 = scmp.lt.s32.totalorder %s16, 0
        %s123 = scalar_select %p122, %s16, 0
        %s124 = smul.addr %s123, 2
        %s125 = smul.addr %s121, 2
        %s126 = sadd.s32 %s124, %s125
        %s127 = smul.addr %s126, 4
        %s128 = scalar_lea.vmem %s0, %s127
      $region24: #{aspp1_forward.1} parent=19 // pred_fallthru
        _
    $region20: #{aspp1_forward.1} parent=5 // pred_fallthru
      _
    %p129 = scmp.le.s32.totalorder 1, %s8
    %p130 = scmp.lt.s32.totalorder %s8, 3
    %p131 = pnand %p129, %p130
    %p132 = pneg %p131
    // Predicated region
    $region25: #{aspp1_forward.1} parent=5 // pred_check
      _
    $region26: #{aspp1_forward.1} parent=5 // pred_check_branch
      %134 = sbr.rel (%p131) target = $region28
    $region27: #{aspp1_forward.1} parent=5 // pred_region
      %s135 = ssub.s32 %s8, 1
      %p136 = scmp.lt.s32.totalorder %s17, 1
      %s137 = scalar_select %p136, %s17, 1
      %p138 = scmp.lt.s32.totalorder %s18, 0
      %s139 = scalar_select %p138, %s18, 0
      %s140 = smul.addr %s139, 2
      %s141 = smul.addr %s137, 2
      %s142 = sadd.s32 %s140, %s141
      %s143 = smul.addr %s142, 4
      %s144 = scalar_lea.vmem %s0, %s143
      %p145 = pneg %p48
      %p146 = pneg %p45
      %p147 = pneg %p69
      %p148 = pneg %p66
      %p149 = pneg %p95
      %p150 = pneg %p92
      %p151 = scmp.lt.s32.totalorder %s17, 1
      %s152 = scalar_select %p151, %s17, 1
      %s153 = smul.addr %s152, 2
      %s154 = scalar_lea.vmem %s2, %s153
      %p155 = scmp.lt.s32.totalorder %s17, 1
      %s156 = scalar_select %p155, %s17, 1
      %p157 = scmp.lt.s32.totalorder %s18, 0
      %s158 = scalar_select %p157, %s18, 0
      %s159 = smul.addr %s158, 2
      %s160 = smul.addr %s156, 2
      %s161 = sadd.s32 %s159, %s160
      %s162 = smul.addr %s161, 4
      %s163 = scalar_lea.vmem %s0, %s162
      %p164 = scmp.lt.s32.totalorder %s17, 1
      %s165 = scalar_select %p164, %s17, 1
      %s166 = smul.addr %s165, 2
      %s167 = scalar_lea.vmem %s2, %s166
      %168 = vst [vmem:[#allocation2] sm:$0xff] 0.0
      %169 = vst [vmem:[#allocation2 + $0x8] sm:$0xff] 0.0
      %170 = vst [vmem:[#allocation2 + $0x30] sm:$0xff] 0.0
      %171 = vst [vmem:[#allocation2 + $0x38] sm:$0xff] 0.0
      %172 = vst [vmem:[#allocation2 + $0x60] sm:$0x3] 0.0
      %173 = vst [vmem:[#allocation2 + $0x68] sm:$0x3] 0.0
      %174 = vst [vmem:[#allocation2 + $0x20] sm:$0xff] 0.0
      %175 = vst [vmem:[#allocation2 + $0x28] sm:$0xff] 0.0
      %176 = vst [vmem:[#allocation2 + $0x50] sm:$0xff] 0.0
      %177 = vst [vmem:[#allocation2 + $0x58] sm:$0xff] 0.0
      %178 = vst [vmem:[#allocation2 + $0x80] sm:$0x3] 0.0
      %179 = vst [vmem:[#allocation2 + $0x88] sm:$0x3] 0.0
      %v180 = vld [vmem:[%s1] sm:$0xff]
      %v181 = vld [vmem:[%s1 + $0x8] sm:$0xff]
      %v182 = vld [vmem:[%s1 + $0x10] sm:$0x3]
      %v183 = vld [vmem:[%s163] sm:$0xff]
      %185 = vst [vmem:[#allocation1] ss:$2 sm:$0xff] %v183
      %v186 = vld.sshfl [vmem:[#allocation1] sm:$0xff pattern:$0x75316420]
      %v187 = vld.sshfl [vmem:[#allocation1 + $0x8] sm:$0xff pattern:$0x75316420]
      %vm188 = vcmask 31744
      %v190 = vsel %vm188, %v180, 0
      %v193 = vsel %vm188, %v181, 0
      %v196 = vsel %vm188, %v182, 0
      %vm198 = vcmask 1043456
      %v199 = vsel %vm198, %v186, 0
      %v201 = vsel %vm198, %v187, 0
      %203 = vmatpush.msra.mxu0 0.0
      %204 = vmatpush.msra.mxu0 0.0
      %205 = vmatpush.msra.mxu0 0.0
      %206 = vmatpush.msra.mxu0 0.0
      %207 = vmatpush.msra.mxu0 0.0
      %208 = vmatpush.msra.mxu0 0.0
      %209 = vmatpush.msra.mxu0 0.0
      %210 = vmatpush.msra.mxu0 0.0
      %211 = vmatpush.msra.mxu0 0.0
      %212 = vmatpush.msra.mxu0 0.0
      %213 = vmatpush.msra.mxu0 0.0
      %214 = vmatpush.msra.mxu0 0.0
      %215 = vmatpush.msra.mxu0 0.0
      %216 = vmatpush.msra.mxu0 0.0
      %217 = vmatpush.msra.mxu0 0.0
      %218 = vmatpush.msra.mxu0 %v199
      %219 = vmatmul.f32.gmra.mxu0 %v190
      %v220 = vpop.f32.mrf.mxu0
      %v221 = vadd.f32 0.0, %v220
      %222 = vmatmul.f32.gmra.mxu0 %v193
      %v223 = vpop.f32.mrf.mxu0
      %v224 = vadd.f32 0.0, %v223
      %225 = vmatmul.f32.gmra.mxu0 %v196
      %v226 = vpop.f32.mrf.mxu0
      %v227 = vadd.f32 0.0, %v226
      %228 = vdwg.mxu0
      %229 = vmatpush.msra.mxu0 0.0
      %230 = vmatpush.msra.mxu0 0.0
      %231 = vmatpush.msra.mxu0 0.0
      %232 = vmatpush.msra.mxu0 0.0
      %233 = vmatpush.msra.mxu0 0.0
      %234 = vmatpush.msra.mxu0 0.0
      %235 = vmatpush.msra.mxu0 0.0
      %236 = vmatpush.msra.mxu0 0.0
      %237 = vmatpush.msra.mxu0 0.0
      %238 = vmatpush.msra.mxu0 0.0
      %239 = vmatpush.msra.mxu0 0.0
      %240 = vmatpush.msra.mxu0 0.0
      %241 = vmatpush.msra.mxu0 0.0
      %242 = vmatpush.msra.mxu0 0.0
      %243 = vmatpush.msra.mxu0 0.0
      %244 = vmatpush.msra.mxu0 %v201
      %245 = vmatmul.f32.gmra.mxu0 %v190
      %v246 = vpop.f32.mrf.mxu0
      %v247 = vadd.f32 0.0, %v246
      %248 = vmatmul.f32.gmra.mxu0 %v193
      %v249 = vpop.f32.mrf.mxu0
      %v250 = vadd.f32 0.0, %v249
      %251 = vmatmul.f32.gmra.mxu0 %v196
      %v252 = vpop.f32.mrf.mxu0
      %v253 = vadd.f32 0.0, %v252
      %254 = vdwg.mxu0
      %255 = vst [vmem:[#allocation2 + $0x10] sm:$0xff] %v221
      %256 = vst [vmem:[#allocation2 + $0x18] sm:$0xff] %v247
      %257 = vst [vmem:[#allocation2 + $0x40] sm:$0xff] %v224
      %258 = vst [vmem:[#allocation2 + $0x48] sm:$0xff] %v250
      %259 = vst [vmem:[#allocation2 + $0x70] sm:$0x3] %v227
      %260 = vst [vmem:[#allocation2 + $0x78] sm:$0x3] %v253
      %vm261 = vcmask 1041409
      %v262 = vsel %vm261, %v227, 0.0
      %v263 = vsel %vm261, %v253, 0.0
      %v264 = vadd.f32 %v262, %v263
      %265 = vadd.xlane.f32.xlu0 %v264
      %v266 = vpop.xlane.xlu0 %265
      %v267 = vadd.f32 %v266, 0.0
      %v268 = vlaneseq
      %v269 = vand.u32 %v268, 127
      %v270 = vadd.s32 %v269, 128
      %v271 = vand.u32 %v269, 15
      %v272 = vand.u32 %v270, 15
      %v273 = vadd.s32 %v271, 4294967284
      %v274 = vadd.s32 %v272, 4294967284
      %vm275 = vcmp.ge.s32.totalorder %v273, 0
      %vm276 = vcmp.ge.s32.totalorder %v274, 0
      %vm277 = vcmp.lt.s32.totalorder %v273, 16
      %vm278 = vcmp.lt.s32.totalorder %v274, 16
      %vm279 = vmand %vm275, %vm277
      %vm280 = vmand %vm276, %vm278
      %v281 = vadd.s32 %v271, 4294967290
      %v282 = vadd.s32 %v272, 4294967290
      %vm283 = vcmp.ge.s32.totalorder %v281, 0
      %vm284 = vcmp.ge.s32.totalorder %v282, 0
      %vm285 = vcmp.lt.s32.totalorder %v281, 16
      %vm286 = vcmp.lt.s32.totalorder %v282, 16
      %vm287 = vmand %vm283, %vm285
      %vm288 = vmand %vm284, %vm286
      %v289 = vadd.s32 %v271, 6
      %v290 = vadd.s32 %v272, 6
      %vm291 = vcmp.ge.s32.totalorder %v289, 0
      %vm292 = vcmp.ge.s32.totalorder %v290, 0
      %vm293 = vcmp.lt.s32.totalorder %v289, 16
      %vm294 = vcmp.lt.s32.totalorder %v290, 16
      %vm295 = vmand %vm291, %vm293
      %vm296 = vmand %vm292, %vm294
      %v297 = vadd.s32 %v271, 12
      %v298 = vadd.s32 %v272, 12
      %vm299 = vcmp.ge.s32.totalorder %v297, 0
      %vm300 = vcmp.ge.s32.totalorder %v298, 0
      %vm301 = vcmp.lt.s32.totalorder %v297, 16
      %vm302 = vcmp.lt.s32.totalorder %v298, 16
      %vm303 = vmand %vm299, %vm301
      %vm304 = vmand %vm300, %vm302
      %v305 = vld [vmem:[#allocation2] ss:$8 sm:$0x7]
      %v307 = vperm.slane %v305, 0
      %v308 = vperm.slane %v305, 1
      %v309 = vperm.slane %v305, 2
      %310 = vrot.lane.b32.xlu0 %v307, 76
      %v311 = vpop.permute.xlu0 %310
      %312 = vrot.lane.b32.xlu0 %v308, 76
      %v313 = vpop.permute.xlu0 %312
      %314 = vrot.lane.b32.xlu0 %v309, 76
      %v315 = vpop.permute.xlu0 %314
      %vm316 = vcmask 621568
      %v317 = vsel %vm316, %v311, %v313
      %v318 = vsel %vm316, %v313, %v315
      %v321 = vsel %vm279, %v317, 0.0
      %v322 = vsel %vm280, %v318, 0.0
      %v325 = vrot.slane %v321, 7
      %v326 = vrot.slane %v322, 7
      %v329 = vadd.f32 %v267, %v325
      %v330 = vadd.f32 %v267, %v326
      %s331 = scalar_lea.vmem [#allocation2], 1
      %v332 = vld [vmem:[%s331] ss:$8 sm:$0x7]
      %v334 = vperm.slane %v332, 0
      %v335 = vperm.slane %v332, 1
      %v336 = vperm.slane %v332, 2
      %337 = vrot.lane.b32.xlu0 %v334, 64
      %v338 = vpop.permute.xlu0 %337
      %339 = vrot.lane.b32.xlu0 %v335, 64
      %v340 = vpop.permute.xlu0 %339
      %341 = vrot.lane.b32.xlu0 %v336, 64
      %v342 = vpop.permute.xlu0 %341
      %vm343 = vcmask 523264
      %v344 = vsel %vm343, %v338, %v340
      %v345 = vsel %vm343, %v340, %v342
      %v348 = vadd.f32 %v329, %v344
      %v349 = vadd.f32 %v330, %v345
      %s350 = scalar_lea.vmem [#allocation2], 2
      %v351 = vld [vmem:[%s350] ss:$8 sm:$0x7]
      %v353 = vperm.slane %v351, 0
      %v354 = vperm.slane %v351, 1
      %v355 = vperm.slane %v351, 2
      %356 = vrot.lane.b32.xlu0 %v353, 52
      %v357 = vpop.permute.xlu0 %356
      %358 = vrot.lane.b32.xlu0 %v354, 52
      %v359 = vpop.permute.xlu0 %358
      %360 = vrot.lane.b32.xlu0 %v355, 52
      %v361 = vpop.permute.xlu0 %360
      %vm362 = vcmask 424960
      %v363 = vsel %vm362, %v357, %v359
      %v364 = vsel %vm362, %v359, %v361
      %v367 = vsel %vm303, %v363, 0.0
      %v368 = vsel %vm304, %v364, 0.0
      %v371 = vrot.slane %v367, 7
      %v372 = vrot.slane %v368, 7
      %v375 = vadd.f32 %v348, %v371
      %v376 = vadd.f32 %v349, %v372
      %s377 = scalar_lea.vmem [#allocation2], 11
      %v378 = vld [vmem:[%s377] ss:$8 sm:$0x7]
      %v380 = vperm.slane %v378, 0
      %v381 = vperm.slane %v378, 1
      %v382 = vperm.slane %v378, 2
      %383 = vrot.lane.b32.xlu0 %v380, 102
      %v384 = vpop.permute.xlu0 %383
      %385 = vrot.lane.b32.xlu0 %v381, 102
      %v386 = vpop.permute.xlu0 %385
      %387 = vrot.lane.b32.xlu0 %v382, 102
      %v388 = vpop.permute.xlu0 %387
      %vm389 = vcmask 834560
      %v390 = vsel %vm389, %v384, %v386
      %v391 = vsel %vm389, %v386, %v388
      %v394 = vsel %vm287, %v390, 0.0
      %v395 = vsel %vm288, %v391, 0.0
      %v398 = vrot.slane %v394, 7
      %v399 = vrot.slane %v395, 7
      %v402 = vadd.f32 %v375, %v398
      %v403 = vadd.f32 %v376, %v399
      %s404 = scalar_lea.vmem [#allocation2], 12
      %v405 = vld [vmem:[%s404] ss:$8 sm:$0x7]
      %v407 = vperm.slane %v405, 0
      %v408 = vperm.slane %v405, 1
      %v409 = vperm.slane %v405, 2
      %410 = vrot.lane.b32.xlu0 %v407, 96
      %v411 = vpop.permute.xlu0 %410
      %412 = vrot.lane.b32.xlu0 %v408, 96
      %v413 = vpop.permute.xlu0 %412
      %414 = vrot.lane.b32.xlu0 %v409, 96
      %v415 = vpop.permute.xlu0 %414
      %vm416 = vcmask 785408
      %v417 = vsel %vm416, %v411, %v413
      %v418 = vsel %vm416, %v413, %v415
      %v421 = vadd.f32 %v402, %v417
      %v422 = vadd.f32 %v403, %v418
      %s423 = scalar_lea.vmem [#allocation2], 13
      %v424 = vld [vmem:[%s423] ss:$8 sm:$0x7]
      %v426 = vperm.slane %v424, 0
      %v427 = vperm.slane %v424, 1
      %v428 = vperm.slane %v424, 2
      %429 = vrot.lane.b32.xlu0 %v426, 90
      %v430 = vpop.permute.xlu0 %429
      %431 = vrot.lane.b32.xlu0 %v427, 90
      %v432 = vpop.permute.xlu0 %431
      %433 = vrot.lane.b32.xlu0 %v428, 90
      %v434 = vpop.permute.xlu0 %433
      %vm435 = vcmask 736256
      %v436 = vsel %vm435, %v430, %v432
      %v437 = vsel %vm435, %v432, %v434
      %v440 = vsel %vm295, %v436, 0.0
      %v441 = vsel %vm296, %v437, 0.0
      %v444 = vrot.slane %v440, 7
      %v445 = vrot.slane %v441, 7
      %v448 = vadd.f32 %v421, %v444
      %v449 = vadd.f32 %v422, %v445
      %s450 = scalar_lea.vmem [#allocation2], 14
      %v451 = vld [vmem:[%s450] ss:$8 sm:$0x7]
      %v453 = vperm.slane %v451, 0
      %v454 = vperm.slane %v451, 1
      %v455 = vperm.slane %v451, 2
      %456 = vrot.lane.b32.xlu0 %v453, 12
      %v457 = vpop.permute.xlu0 %456
      %458 = vrot.lane.b32.xlu0 %v454, 12
      %v459 = vpop.permute.xlu0 %458
      %460 = vrot.lane.b32.xlu0 %v455, 12
      %v461 = vpop.permute.xlu0 %460
      %vm462 = vcmask 97280
      %v463 = vsel %vm462, %v457, %v459
      %v464 = vsel %vm462, %v459, %v461
      %v467 = vsel %vm279, %v463, 0.0
      %v468 = vsel %vm280, %v464, 0.0
      %v471 = vrot.slane %v467, 7
      %v472 = vrot.slane %v468, 7
      %v475 = vadd.f32 %v448, %v471
      %v476 = vadd.f32 %v449, %v472
      %s477 = scalar_lea.vmem [#allocation2], 15
      %v478 = vld [vmem:[%s477] ss:$8 sm:$0x7]
      %v480 = vperm.slane %v478, 0
      %v481 = vperm.slane %v478, 1
      %v482 = vperm.slane %v478, 2
      %483 = vrot.lane.b32.xlu0 %v480, 6
      %v484 = vpop.permute.xlu0 %483
      %485 = vrot.lane.b32.xlu0 %v481, 6
      %v486 = vpop.permute.xlu0 %485
      %487 = vrot.lane.b32.xlu0 %v482, 6
      %v488 = vpop.permute.xlu0 %487
      %vm489 = vcmask 48128
      %v490 = vsel %vm489, %v484, %v486
      %v491 = vsel %vm489, %v486, %v488
      %v494 = vsel %vm287, %v490, 0.0
      %v495 = vsel %vm288, %v491, 0.0
      %v498 = vrot.slane %v494, 7
      %v499 = vrot.slane %v495, 7
      %v502 = vadd.f32 %v475, %v498
      %v503 = vadd.f32 %v476, %v499
      %s504 = scalar_lea.vmem [#allocation2], 64
      %v505 = vld [vmem:[%s504] ss:$8 sm:$0x3]
      %v507 = vperm.slane %v505, 0
      %v508 = vperm.slane %v505, 1
      %v511 = vadd.f32 %v502, %v507
      %v512 = vadd.f32 %v503, %v508
      %s513 = scalar_lea.vmem [#allocation2], 65
      %v514 = vld [vmem:[%s513] ss:$8 sm:$0x7]
      %v516 = vperm.slane %v514, 0
      %v517 = vperm.slane %v514, 1
      %v518 = vperm.slane %v514, 2
      %519 = vrot.lane.b32.xlu0 %v516, 122
      %v520 = vpop.permute.xlu0 %519
      %521 = vrot.lane.b32.xlu0 %v517, 122
      %v522 = vpop.permute.xlu0 %521
      %523 = vrot.lane.b32.xlu0 %v518, 122
      %v524 = vpop.permute.xlu0 %523
      %vm525 = vcmask 998400
      %v526 = vsel %vm525, %v520, %v522
      %v527 = vsel %vm525, %v522, %v524
      %v530 = vsel %vm295, %v526, 0.0
      %v531 = vsel %vm296, %v527, 0.0
      %v534 = vrot.slane %v530, 7
      %v535 = vrot.slane %v531, 7
      %v538 = vadd.f32 %v511, %v534
      %v539 = vadd.f32 %v512, %v535
      %s540 = scalar_lea.vmem [#allocation2], 66
      %v541 = vld [vmem:[%s540] ss:$8 sm:$0x7]
      %v543 = vperm.slane %v541, 0
      %v544 = vperm.slane %v541, 1
      %v545 = vperm.slane %v541, 2
      %546 = vrot.lane.b32.xlu0 %v543, 116
      %v547 = vpop.permute.xlu0 %546
      %548 = vrot.lane.b32.xlu0 %v544, 116
      %v549 = vpop.permute.xlu0 %548
      %550 = vrot.lane.b32.xlu0 %v545, 116
      %v551 = vpop.permute.xlu0 %550
      %vm552 = vcmask 949248
      %v553 = vsel %vm552, %v547, %v549
      %v554 = vsel %vm552, %v549, %v551
      %v557 = vsel %vm303, %v553, 0.0
      %v558 = vsel %vm304, %v554, 0.0
      %v561 = vrot.slane %v557, 7
      %v562 = vrot.slane %v558, 7
      %v565 = vadd.f32 %v538, %v561
      %v566 = vadd.f32 %v539, %v562
      %s567 = scalar_lea.vmem [#allocation2], 67
      %v568 = vld [vmem:[%s567] ss:$8 sm:$0x7]
      %v570 = vperm.slane %v568, 0
      %v571 = vperm.slane %v568, 1
      %v572 = vperm.slane %v568, 2
      %573 = vrot.lane.b32.xlu0 %v570, 38
      %v574 = vpop.permute.xlu0 %573
      %575 = vrot.lane.b32.xlu0 %v571, 38
      %v576 = vpop.permute.xlu0 %575
      %577 = vrot.lane.b32.xlu0 %v572, 38
      %v578 = vpop.permute.xlu0 %577
      %vm579 = vcmask 310272
      %v580 = vsel %vm579, %v574, %v576
      %v581 = vsel %vm579, %v576, %v578
      %v584 = vsel %vm287, %v580, 0.0
      %v585 = vsel %vm288, %v581, 0.0
      %v588 = vrot.slane %v584, 7
      %v589 = vrot.slane %v585, 7
      %v592 = vadd.f32 %v565, %v588
      %v593 = vadd.f32 %v566, %v589
      %s594 = scalar_lea.vmem [#allocation2], 68
      %v595 = vld [vmem:[%s594] ss:$8 sm:$0x7]
      %v597 = vperm.slane %v595, 0
      %v598 = vperm.slane %v595, 1
      %v599 = vperm.slane %v595, 2
      %600 = vrot.lane.b32.xlu0 %v597, 32
      %v601 = vpop.permute.xlu0 %600
      %602 = vrot.lane.b32.xlu0 %v598, 32
      %v603 = vpop.permute.xlu0 %602
      %604 = vrot.lane.b32.xlu0 %v599, 32
      %v605 = vpop.permute.xlu0 %604
      %vm606 = vcmask 261120
      %v607 = vsel %vm606, %v601, %v603
      %v608 = vsel %vm606, %v603, %v605
      %v611 = vadd.f32 %v592, %v607
      %v612 = vadd.f32 %v593, %v608
      %s613 = scalar_lea.vmem [#allocation2], 69
      %v614 = vld [vmem:[%s613] ss:$8 sm:$0x7]
      %v616 = vperm.slane %v614, 0
      %v617 = vperm.slane %v614, 1
      %v618 = vperm.slane %v614, 2
      %619 = vrot.lane.b32.xlu0 %v616, 26
      %v620 = vpop.permute.xlu0 %619
      %621 = vrot.lane.b32.xlu0 %v617, 26
      %v622 = vpop.permute.xlu0 %621
      %623 = vrot.lane.b32.xlu0 %v618, 26
      %v624 = vpop.permute.xlu0 %623
      %vm625 = vcmask 211968
      %v626 = vsel %vm625, %v620, %v622
      %v627 = vsel %vm625, %v622, %v624
      %v630 = vsel %vm295, %v626, 0.0
      %v631 = vsel %vm296, %v627, 0.0
      %v634 = vrot.slane %v630, 7
      %v635 = vrot.slane %v631, 7
      %v638 = vadd.f32 %v611, %v634
      %v639 = vadd.f32 %v612, %v635
      %s640 = scalar_lea.vmem [#allocation2], 78
      %v641 = vld [vmem:[%s640] ss:$8 sm:$0x7]
      %v643 = vperm.slane %v641, 0
      %v644 = vperm.slane %v641, 1
      %v645 = vperm.slane %v641, 2
      %646 = vrot.lane.b32.xlu0 %v643, 76
      %v647 = vpop.permute.xlu0 %646
      %648 = vrot.lane.b32.xlu0 %v644, 76
      %v649 = vpop.permute.xlu0 %648
      %650 = vrot.lane.b32.xlu0 %v645, 76
      %v651 = vpop.permute.xlu0 %650
      %v652 = vsel %vm316, %v647, %v649
      %v653 = vsel %vm316, %v649, %v651
      %v656 = vsel %vm279, %v652, 0.0
      %v657 = vsel %vm280, %v653, 0.0
      %v660 = vrot.slane %v656, 7
      %v661 = vrot.slane %v657, 7
      %v664 = vadd.f32 %v638, %v660
      %v665 = vadd.f32 %v639, %v661
      %s666 = scalar_lea.vmem [#allocation2], 79
      %v667 = vld [vmem:[%s666] ss:$8 sm:$0x7]
      %v669 = vperm.slane %v667, 0
      %v670 = vperm.slane %v667, 1
      %v671 = vperm.slane %v667, 2
      %672 = vrot.lane.b32.xlu0 %v669, 64
      %v673 = vpop.permute.xlu0 %672
      %674 = vrot.lane.b32.xlu0 %v670, 64
      %v675 = vpop.permute.xlu0 %674
      %676 = vrot.lane.b32.xlu0 %v671, 64
      %v677 = vpop.permute.xlu0 %676
      %v678 = vsel %vm343, %v673, %v675
      %v679 = vsel %vm343, %v675, %v677
      %v682 = vadd.f32 %v664, %v678
      %v683 = vadd.f32 %v665, %v679
      %s684 = scalar_lea.vmem [#allocation2], 120
      %v685 = vld [vmem:[%s684] ss:$8 sm:$0x7]
      %v687 = vperm.slane %v685, 0
      %v688 = vperm.slane %v685, 1
      %v689 = vperm.slane %v685, 2
      %690 = vrot.lane.b32.xlu0 %v687, 52
      %v691 = vpop.permute.xlu0 %690
      %692 = vrot.lane.b32.xlu0 %v688, 52
      %v693 = vpop.permute.xlu0 %692
      %694 = vrot.lane.b32.xlu0 %v689, 52
      %v695 = vpop.permute.xlu0 %694
      %v696 = vsel %vm362, %v691, %v693
      %v697 = vsel %vm362, %v693, %v695
      %v700 = vsel %vm303, %v696, 0.0
      %v701 = vsel %vm304, %v697, 0.0
      %v704 = vrot.slane %v700, 7
      %v705 = vrot.slane %v701, 7
      %v708 = vadd.f32 %v682, %v704
      %v709 = vadd.f32 %v683, %v705
      %p710 = scmp.eq.s32.totalorder %s18, 0
      // Predicated region
      $region29: #{aspp1_forward.1} parent=27 // pred_check
        %p711 = pneg %p710
      $region30: #{aspp1_forward.1} parent=27 // pred_check_branch
        %713 = sbr.rel (%p711) target = $region32
      $region31: #{aspp1_forward.1} parent=27 // pred_region
        %v714 = vlaneseq
        %vm715 = vcmp.ge.s32.totalorder %v714, 0
        %vm716 = vcmp.lt.s32.totalorder %v714, 256
        %vm717 = vmand %vm715, %vm716
        %718 = vst.msk [vmem:[%s167] sm:$0x3] %vm717, 0.0
      $region32: #{aspp1_forward.1} parent=27 // pred_fallthru
        _
      %v719 = vld [vmem:[%s167] sm:$0x3]
      %722 = vst [vmem:[#allocation1] sm:$0xff] %v708
      %723 = vst [vmem:[#allocation1 + $0x9] sm:$0xff] %v709
      %s724 = scalar_lea.vmem [#allocation1], 1
      %v725 = vld [vmem:[%s724] ss:$9 sm:$0xff]
      %v727 = vadd.f32 %v719, %v725
      %v728 = vlaneseq
      %vm729 = vcmp.ge.s32.totalorder %v728, 0
      %vm730 = vcmp.lt.s32.totalorder %v728, 256
      %vm731 = vmand %vm729, %vm730
      %732 = vst.msk [vmem:[%s167] sm:$0x3] %vm731, %v727
      %p733 = scmp.lt.s32.totalorder %s17, 1
      %s734 = scalar_select %p733, %s17, 1
      %s735 = smul.addr %s734, 2
      %s736 = scalar_lea.vmem %s2, %s735
      // Predicated region
      $region33: #{aspp1_forward.1} parent=27 // pred_check
        %p737 = pneg %p92
      $region34: #{aspp1_forward.1} parent=27 // pred_check_branch
        %739 = sbr.rel (%p737) target = $region36
      $region35: #{aspp1_forward.1} parent=27 // pred_region
        _
      $region36: #{aspp1_forward.1} parent=27 // pred_fallthru
        _
    $region28: #{aspp1_forward.1} parent=5 // pred_fallthru
      _
    %p740 = scmp.le.s32.totalorder 2, %s8
    // Predicated region
    $region37: #{aspp1_forward.1} parent=5 // pred_check
      %p741 = pneg %p740
    $region38: #{aspp1_forward.1} parent=5 // pred_check_branch
      %743 = sbr.rel (%p741) target = $region40
    $region39: #{aspp1_forward.1} parent=5 // pred_region
      %s744 = ssub.s32 %s8, 2
      // Predicated region
      $region41: #{aspp1_forward.1} parent=39 // pred_check
        %p745 = pneg %p98
      $region42: #{aspp1_forward.1} parent=39 // pred_check_branch
        %747 = sbr.rel (%p745) target = $region44
      $region43: #{aspp1_forward.1} parent=39 // pred_region
        %p748 = scmp.lt.s32.totalorder %s19, 1
        %s749 = scalar_select %p748, %s19, 1
        %s750 = smul.addr %s749, 2
        %s751 = scalar_lea.vmem %s2, %s750
      $region44: #{aspp1_forward.1} parent=39 // pred_fallthru
        _
    $region40: #{aspp1_forward.1} parent=5 // pred_fallthru
      _
  $region6: #{aspp1_forward.1} parent=0 // loop_footer
    %s12 = sadd.s32 1, %s8
  $region7: #{aspp1_forward.1} parent=0 // loop_footer_branch
    %7 = sbr.rel target = $region3
  $region8: #{aspp1_forward.1} parent=0 // loop_exit
    _

</llo_original>
